<compile_context>
chip_gen: v5e
topology: v5e:2x2
jax: 0.10.0
libtpu: 0.0.40
codegen_flags: <defaults>
</compile_context>

<pallas_src>
import functools

import jax
import jax.numpy as jnp
from jax.experimental import pallas as pl
from jax.experimental.pallas import tpu as pltpu

F_IN = 120   # dense1 in_features
F_H1 = 128   # dense1 out / dense2 in / inv_dense2 out / inv_dense1 in
F_H2 = 512   # dense2 out / inv_dense2 in
F_OUT = 120  # inv_dense1 out_features
_SUB = 8     # f32 sublane granularity


def _round_up(n, m):
    return ((n + m - 1) // m) * m


def _softplus(z):
    # numerically stable log(1 + exp(z)) -- matches torch.nn.Softplus(beta=1)
    return jnp.maximum(z, 0.0) + jnp.log1p(jnp.exp(-jnp.abs(z)))


# ---------------------------------------------------------------------------
# kernel: full 4-layer MLP forward for one (tb, 120) batch tile, all in VMEM
# ---------------------------------------------------------------------------
def dsebm_kernel(x_ref,
                 w1_ref, b1_ref, w2_ref, b2_ref,
                 w3_ref, b3_ref, w4_ref, b4_ref,
                 o_ref, *, act_dtype):
    """* layer-1 matmul in f32 (K=120, sublane-aligned; MXU is not binding)
       * layers 2-4 matmuls in the weights' dtype (bf16 by default) with f32
         MXU accumulation; bias adds stay in f32
       * softplus in `act_dtype` (bf16 where the EUP has a bf16 path, else f32)
    """
    mm_dt = w2_ref.dtype

    h = x_ref[...]                                                    # (tb,120) f32
    z = jnp.dot(h, w1_ref[...], preferred_element_type=jnp.float32) + b1_ref[...]
    h = _softplus(z.astype(act_dtype)).astype(mm_dt)                  # (tb,128)
    z = jnp.dot(h, w2_ref[...], preferred_element_type=jnp.float32) + b2_ref[...]
    h = _softplus(z.astype(act_dtype)).astype(mm_dt)                  # (tb,512)
    z = jnp.dot(h, w3_ref[...], preferred_element_type=jnp.float32) + b3_ref[...]
    h = _softplus(z.astype(act_dtype)).astype(mm_dt)                  # (tb,128)
    z = jnp.dot(h, w4_ref[...], preferred_element_type=jnp.float32) + b4_ref[...]
    o_ref[...] = _softplus(z.astype(act_dtype)).astype(o_ref.dtype)   # (tb,120)


# ---------------------------------------------------------------------------
# chip introspection (all guarded: fall back to conservative defaults)
# ---------------------------------------------------------------------------
def _tpu_vmem_capacity_bytes():
    try:
        info = pltpu.get_tpu_info()
        cap = int(getattr(info, "vmem_capacity_bytes", 0))
        if cap > 0:
            return cap
    except Exception:
        pass
    return 64 * 1024 * 1024  # conservative (v7x per-TC VMEM)


def _tensorcores_per_chip():
    try:
        dev = jax.devices()[0]
        for attr in ("num_cores", "core_count"):
            v = getattr(dev, attr, None)
            if isinstance(v, int) and v > 0:
                return min(v, 2)   # at most 2 TCs per chip today
    except Exception:
        pass
    return 1


def _default_act_dtype(compute_dtype):
    # v5e (and older) have no bf16 VPU/EUP path: bf16 softplus only inserts
    # pack/unpack converts there.  On v6e/v7x the bf16 EUP (~2x) is the unit
    # that actually binds for this net, so bf16 activations are worth it.
    try:
        kind = jax.devices()[0].device_kind.lower()
    except Exception:
        kind = ""
    if any(t in kind for t in ("v2", "v3", "v4", "v5")):
        return jnp.float32
    return jnp.dtype(compute_dtype)


# ---------------------------------------------------------------------------
# one-time parameter prep (hoisted out of the per-call path)
# ---------------------------------------------------------------------------
def prepare_params(params, *, compute_dtype=jnp.bfloat16):
    """Cast the big layer-2..4 weights to the matmul compute dtype once;
    keep biases and the small layer-1 weight in f32.  Weights are stored
    transposed: (in_features, out_features).  Call once and reuse."""
    w1, b1, w2, b2, w3, b3, w4, b4 = params
    cdt = jnp.dtype(compute_dtype)
    f32 = jnp.float32
    return (w1.astype(f32), b1.reshape(1, -1).astype(f32),
            w2.astype(cdt), b2.reshape(1, -1).astype(f32),
            w3.astype(cdt), b3.reshape(1, -1).astype(f32),
            w4.astype(cdt), b4.reshape(1, -1).astype(f32))


# ---------------------------------------------------------------------------
# batch-tile selection against a per-generation VMEM budget
# ---------------------------------------------------------------------------
def _pick_batch_tile(B, tb_req, vmem_limit_bytes, weight_vmem_bytes, num_cores):
    if B <= _SUB:
        # block dim equal to the full array dim is always legal
        return max(1, B)

    # conservative (all-f32) per-row VMEM estimate: dbl-buffered in/out blocks
    # + the (tb,512) matmul result + (tb,512) activation + 128-wide temps
    bytes_per_row = (2 * F_IN * 4 + 2 * F_OUT * 4
                     + F_H2 * 4 + F_H2 * 4 + 4 * F_H1 * 4)   # ~8 KiB/row
    budget = (vmem_limit_bytes * 3) // 4 - weight_vmem_bytes
    tb_max = max(_SUB, (budget // bytes_per_row) // _SUB * _SUB)

    tb_cap = (B // _SUB) * _SUB          # keep the block inside the array
    tb = max(_SUB, min(_round_up(tb_req, _SUB), tb_max, tb_cap))

    if num_cores > 1 and pl.cdiv(B, tb) < num_cores:
        # only on multi-TC chips (v7x): give the "parallel" batch axis at
        # least one grid step per TensorCore
        tb = min(tb_cap, max(_SUB, _round_up(pl.cdiv(B, num_cores), _SUB)))
    return tb


# ---------------------------------------------------------------------------
# forward
# ---------------------------------------------------------------------------
def network_forward(x, params=None, *, prepared=None, tb=4096,
                    compute_dtype=jnp.bfloat16, act_dtype=None):
    """x: (B, 120) float32 -> (B, 120) float32.

    `prepared` = prepare_params(...) should be computed once and reused; raw
    `params` are accepted for convenience."""
    B, f_in = x.shape
    assert f_in == F_IN
    if prepared is None:
        prepared = prepare_params(params, compute_dtype=compute_dtype)
    w1, b1, w2, b2, w3, b3, w4, b4 = prepared
    cdt = jnp.dtype(w2.dtype)
    if act_dtype is None:
        act_dtype = _default_act_dtype(cdt)

    # per-generation VMEM budget (64 MiB/TC on v7x, 128 MiB on v5e/v6e)
    vmem_cap = _tpu_vmem_capacity_bytes()
    vmem_limit = max(32 * 1024 * 1024,
                     min((vmem_cap * 3) // 4, 100 * 1024 * 1024))

    num_cores = _tensorcores_per_chip()
    weight_vmem = 2 * sum(int(a.size) * a.dtype.itemsize for a in prepared)
    tb = _pick_batch_tile(B, tb, vmem_limit, weight_vmem, num_cores)
    grid = (pl.cdiv(B, tb),)

    def resident(a):
        # Whole-array block whose index never changes across the grid: Pallas
        # keeps it resident in VMEM (no per-step re-DMA).  The default 2-deep
        # buffering only costs ~0.4 MiB extra for these small weights, so we
        # skip pl.Buffered(1) and keep the spec maximally portable.
        nd = a.ndim
        return pl.BlockSpec(a.shape, lambda i, _nd=nd: (0,) * _nd)

    # advisory cost hint for XLA's scheduler
    flops = 2 * B * (F_IN * F_H1 + F_H1 * F_H2 + F_H2 * F_H1 + F_H1 * F_OUT)
    transcendentals = 2 * B * (F_H1 + F_H2 + F_H1 + F_OUT)   # exp + log1p
    bytes_accessed = int(B * F_IN * 4 + B * F_OUT * 4
                         + sum(int(a.size) * a.dtype.itemsize for a in prepared))

    out = pl.pallas_call(
        functools.partial(dsebm_kernel, act_dtype=act_dtype),
        out_shape=jax.ShapeDtypeStruct((B, F_OUT), jnp.float32),
        grid_spec=pltpu.PrefetchScalarGridSpec(
            num_scalar_prefetch=0,
            grid=grid,
            in_specs=[
                pl.BlockSpec((tb, F_IN), lambda i: (i, 0)),
                resident(w1), resident(b1),
                resident(w2), resident(b2),
                resident(w3), resident(b3),
                resident(w4), resident(b4),
            ],
            out_specs=pl.BlockSpec((tb, F_OUT), lambda i: (i, 0)),
        ),
        compiler_params=pltpu.CompilerParams(
            dimension_semantics=("parallel",),
            vmem_limit_bytes=int(vmem_limit),
        ),
        cost_estimate=pl.CostEstimate(
            flops=flops,
            transcendentals=transcendentals,
            bytes_accessed=bytes_accessed),
    )(x.astype(jnp.float32), w1, b1, w2, b2, w3, b3, w4, b4)

    return out


# ---------------------------------------------------------------------------
# reference + init
# ---------------------------------------------------------------------------
def init_params(key):
    """nn.Linear-style init (uniform +/- 1/sqrt(fan_in)); W stored as (in,out)."""
    dims = [(120, 128), (128, 512), (512, 128), (128, 120)]
    params = []
    for fan_in, fan_out in dims:
        key, kw, kb = jax.random.split(key, 3)
        bound = 1.0 / jnp.sqrt(fan_in)
        w = jax.random.uniform(kw, (fan_in, fan_out), jnp.float32, -bound, bound)
        b = jax.random.uniform(kb, (1, fan_out), jnp.float32, -bound, bound)
        params += [w, b]
    return tuple(params)


def reference_forward(x, params):
    w1, b1, w2, b2, w3, b3, w4, b4 = params
    h = jax.nn.softplus(x @ w1 + b1)
    h = jax.nn.softplus(h @ w2 + b2)
    h = jax.nn.softplus(h @ w3 + b3)
    h = jax.nn.softplus(h @ w4 + b4)
    return h


if __name__ == "__main__":
    key = jax.random.PRNGKey(0)
    kx1, kx2, kp = jax.random.split(key, 3)
    params = init_params(kp)

    # Test 1: f32 compute path, tight tolerance (verifies plumbing).
    prepared_f32 = prepare_params(params, compute_dtype=jnp.float32)
    x1 = jax.random.normal(kx1, (8, 120), jnp.float32)
    out1 = jax.block_until_ready(network_forward(x1, prepared=prepared_f32))
    ref1 = reference_forward(x1, params)
    assert out1.shape == (8, 120)
    assert jnp.allclose(out1, ref1, atol=1e-5, rtol=1e-5), "f32 path mismatch"

    # Test 2: default bf16 matmul path with a ragged batch (exercises the
    # multi-step grid and Pallas edge-block masking), relaxed bf16 tolerance.
    prepared_bf16 = prepare_params(params, compute_dtype=jnp.bfloat16)
    x2 = jax.random.normal(kx2, (50, 120), jnp.float32)
    out2 = jax.block_until_ready(network_forward(x2, prepared=prepared_bf16))
    ref2 = reference_forward(x2, params)
    assert out2.shape == (50, 120)
    assert jnp.allclose(out2, ref2, atol=5e-2, rtol=5e-2), "bf16 path mismatch"

    print("KERNEL_OK")
</pallas_src>

<mosaic_0001>
module attributes {stable_mosaic.version = 11 : i64} {
  func.func @dsebm_kernel(%arg0: i32, %arg1: memref<8x120xf32, #tpu.memory_space<vmem>>, %arg2: memref<120x128xf32, #tpu.memory_space<vmem>>, %arg3: memref<1x128xf32, #tpu.memory_space<vmem>>, %arg4: memref<128x512xf32, #tpu.memory_space<vmem>>, %arg5: memref<1x512xf32, #tpu.memory_space<vmem>>, %arg6: memref<512x128xf32, #tpu.memory_space<vmem>>, %arg7: memref<1x128xf32, #tpu.memory_space<vmem>>, %arg8: memref<128x120xf32, #tpu.memory_space<vmem>>, %arg9: memref<1x120xf32, #tpu.memory_space<vmem>>, %arg10: memref<8x120xf32, #tpu.memory_space<vmem>>) attributes {dimension_semantics = [#tpu.dimension_semantics<parallel>], iteration_bounds = array<i64: 1>, scalar_prefetch = 0 : i64, scratch_operands = 0 : i64, tpu.core_type = #tpu.core_type<tc>, window_params = [{transform_indices = @transform_0, window_bounds = array<i64: 8, 120>}, {pipeline_mode = #tpu.pipeline_mode<synchronous>, transform_indices = @transform_1, window_bounds = array<i64: 120, 128>}, {pipeline_mode = #tpu.pipeline_mode<synchronous>, transform_indices = @transform_2, window_bounds = array<i64: 1, 128>}, {pipeline_mode = #tpu.pipeline_mode<synchronous>, transform_indices = @transform_3, window_bounds = array<i64: 128, 512>}, {pipeline_mode = #tpu.pipeline_mode<synchronous>, transform_indices = @transform_4, window_bounds = array<i64: 1, 512>}, {pipeline_mode = #tpu.pipeline_mode<synchronous>, transform_indices = @transform_5, window_bounds = array<i64: 512, 128>}, {pipeline_mode = #tpu.pipeline_mode<synchronous>, transform_indices = @transform_6, window_bounds = array<i64: 1, 128>}, {pipeline_mode = #tpu.pipeline_mode<synchronous>, transform_indices = @transform_7, window_bounds = array<i64: 128, 120>}, {pipeline_mode = #tpu.pipeline_mode<synchronous>, transform_indices = @transform_8, window_bounds = array<i64: 1, 120>}, {transform_indices = @transform_9, window_bounds = array<i64: 8, 120>}]} {
    %c0 = arith.constant 0 : index
    %c0_0 = arith.constant 0 : index
    %0 = vector.load %arg1[%c0, %c0_0] : memref<8x120xf32, #tpu.memory_space<vmem>>, vector<8x120xf32>
    %c0_1 = arith.constant 0 : index
    %c0_2 = arith.constant 0 : index
    %1 = vector.load %arg2[%c0_1, %c0_2] : memref<120x128xf32, #tpu.memory_space<vmem>>, vector<120x128xf32>
    %cst = arith.constant dense<0.000000e+00> : vector<8x128xf32>
    %2 = tpu.matmul %0, %1, %cst {dimension_numbers = #tpu.dot_dimension_numbers<[1], [0], [0], [1], [0, 0, 1, 1], [], []>} : vector<8x120xf32>, vector<120x128xf32>, vector<8x128xf32> -> vector<8x128xf32>
    %c0_3 = arith.constant 0 : index
    %c0_4 = arith.constant 0 : index
    %3 = vector.load %arg3[%c0_3, %c0_4] : memref<1x128xf32, #tpu.memory_space<vmem>>, vector<1x128xf32>
    %4 = vector.broadcast %3 : vector<1x128xf32> to vector<8x128xf32>
    %5 = arith.addf %2, %4 : vector<8x128xf32>
    %cst_5 = arith.constant 0.000000e+00 : f32
    %6 = vector.broadcast %cst_5 : f32 to vector<8x128xf32>
    %7 = arith.maximumf %5, %6 : vector<8x128xf32>
    %8 = math.absf %5 : vector<8x128xf32>
    %cst_6 = arith.constant 0.000000e+00 : f32
    %9 = vector.broadcast %cst_6 : f32 to vector<8x128xf32>
    %10 = arith.subf %9, %8 : vector<8x128xf32>
    %11 = math.exp %10 : vector<8x128xf32>
    %12 = math.log1p %11 : vector<8x128xf32>
    %13 = arith.addf %7, %12 : vector<8x128xf32>
    %c0_7 = arith.constant 0 : index
    %c0_8 = arith.constant 0 : index
    %14 = vector.load %arg4[%c0_7, %c0_8] : memref<128x512xf32, #tpu.memory_space<vmem>>, vector<128x512xf32>
    %cst_9 = arith.constant dense<0.000000e+00> : vector<8x512xf32>
    %15 = tpu.matmul %13, %14, %cst_9 {dimension_numbers = #tpu.dot_dimension_numbers<[1], [0], [0], [1], [0, 0, 1, 1], [], []>} : vector<8x128xf32>, vector<128x512xf32>, vector<8x512xf32> -> vector<8x512xf32>
    %c0_10 = arith.constant 0 : index
    %c0_11 = arith.constant 0 : index
    %16 = vector.load %arg5[%c0_10, %c0_11] : memref<1x512xf32, #tpu.memory_space<vmem>>, vector<1x512xf32>
    %17 = vector.broadcast %16 : vector<1x512xf32> to vector<8x512xf32>
    %18 = arith.addf %15, %17 : vector<8x512xf32>
    %cst_12 = arith.constant 0.000000e+00 : f32
    %19 = vector.broadcast %cst_12 : f32 to vector<8x512xf32>
    %20 = arith.maximumf %18, %19 : vector<8x512xf32>
    %21 = math.absf %18 : vector<8x512xf32>
    %cst_13 = arith.constant 0.000000e+00 : f32
    %22 = vector.broadcast %cst_13 : f32 to vector<8x512xf32>
    %23 = arith.subf %22, %21 : vector<8x512xf32>
    %24 = math.exp %23 : vector<8x512xf32>
    %25 = math.log1p %24 : vector<8x512xf32>
    %26 = arith.addf %20, %25 : vector<8x512xf32>
    %c0_14 = arith.constant 0 : index
    %c0_15 = arith.constant 0 : index
    %27 = vector.load %arg6[%c0_14, %c0_15] : memref<512x128xf32, #tpu.memory_space<vmem>>, vector<512x128xf32>
    %cst_16 = arith.constant dense<0.000000e+00> : vector<8x128xf32>
    %28 = tpu.matmul %26, %27, %cst_16 {dimension_numbers = #tpu.dot_dimension_numbers<[1], [0], [0], [1], [0, 0, 1, 1], [], []>} : vector<8x512xf32>, vector<512x128xf32>, vector<8x128xf32> -> vector<8x128xf32>
    %c0_17 = arith.constant 0 : index
    %c0_18 = arith.constant 0 : index
    %29 = vector.load %arg7[%c0_17, %c0_18] : memref<1x128xf32, #tpu.memory_space<vmem>>, vector<1x128xf32>
    %30 = vector.broadcast %29 : vector<1x128xf32> to vector<8x128xf32>
    %31 = arith.addf %28, %30 : vector<8x128xf32>
    %cst_19 = arith.constant 0.000000e+00 : f32
    %32 = vector.broadcast %cst_19 : f32 to vector<8x128xf32>
    %33 = arith.maximumf %31, %32 : vector<8x128xf32>
    %34 = math.absf %31 : vector<8x128xf32>
    %cst_20 = arith.constant 0.000000e+00 : f32
    %35 = vector.broadcast %cst_20 : f32 to vector<8x128xf32>
    %36 = arith.subf %35, %34 : vector<8x128xf32>
    %37 = math.exp %36 : vector<8x128xf32>
    %38 = math.log1p %37 : vector<8x128xf32>
    %39 = arith.addf %33, %38 : vector<8x128xf32>
    %c0_21 = arith.constant 0 : index
    %c0_22 = arith.constant 0 : index
    %40 = vector.load %arg8[%c0_21, %c0_22] : memref<128x120xf32, #tpu.memory_space<vmem>>, vector<128x120xf32>
    %cst_23 = arith.constant dense<0.000000e+00> : vector<8x120xf32>
    %41 = tpu.matmul %39, %40, %cst_23 {dimension_numbers = #tpu.dot_dimension_numbers<[1], [0], [0], [1], [0, 0, 1, 1], [], []>} : vector<8x128xf32>, vector<128x120xf32>, vector<8x120xf32> -> vector<8x120xf32>
    %c0_24 = arith.constant 0 : index
    %c0_25 = arith.constant 0 : index
    %42 = vector.load %arg9[%c0_24, %c0_25] : memref<1x120xf32, #tpu.memory_space<vmem>>, vector<1x120xf32>
    %43 = vector.broadcast %42 : vector<1x120xf32> to vector<8x120xf32>
    %44 = arith.addf %41, %43 : vector<8x120xf32>
    %cst_26 = arith.constant 0.000000e+00 : f32
    %45 = vector.broadcast %cst_26 : f32 to vector<8x120xf32>
    %46 = arith.maximumf %44, %45 : vector<8x120xf32>
    %47 = math.absf %44 : vector<8x120xf32>
    %cst_27 = arith.constant 0.000000e+00 : f32
    %48 = vector.broadcast %cst_27 : f32 to vector<8x120xf32>
    %49 = arith.subf %48, %47 : vector<8x120xf32>
    %50 = math.exp %49 : vector<8x120xf32>
    %51 = math.log1p %50 : vector<8x120xf32>
    %52 = arith.addf %46, %51 : vector<8x120xf32>
    %c0_28 = arith.constant 0 : index
    %c0_29 = arith.constant 0 : index
    %53 = vector.load %arg10[%c0_28, %c0_29] : memref<8x120xf32, #tpu.memory_space<vmem>>, vector<8x120xf32>
    tpu.vector_store %arg10[%c0_28, %c0_29], %52 {strides = array<i32>} : memref<8x120xf32, #tpu.memory_space<vmem>>, vector<8x120xf32>,
    return
  }
  func.func @transform_0(%arg0: i32) -> (i32, i32) {
    %c0_i32 = arith.constant 0 : i32
    %c0_i32_0 = arith.constant 0 : i32
    return %arg0, %c0_i32 : i32, i32
  }
  func.func @transform_1(%arg0: i32) -> (i32, i32) {
    %c0_i32 = arith.constant 0 : i32
    %c0_i32_0 = arith.constant 0 : i32
    %c0_i32_1 = arith.constant 0 : i32
    return %c0_i32, %c0_i32_0 : i32, i32
  }
  func.func @transform_2(%arg0: i32) -> (i32, i32) {
    %c0_i32 = arith.constant 0 : i32
    %c0_i32_0 = arith.constant 0 : i32
    %c0_i32_1 = arith.constant 0 : i32
    return %c0_i32, %c0_i32_0 : i32, i32
  }
  func.func @transform_3(%arg0: i32) -> (i32, i32) {
    %c0_i32 = arith.constant 0 : i32
    %c0_i32_0 = arith.constant 0 : i32
    %c0_i32_1 = arith.constant 0 : i32
    return %c0_i32, %c0_i32_0 : i32, i32
  }
  func.func @transform_4(%arg0: i32) -> (i32, i32) {
    %c0_i32 = arith.constant 0 : i32
    %c0_i32_0 = arith.constant 0 : i32
    %c0_i32_1 = arith.constant 0 : i32
    return %c0_i32, %c0_i32_0 : i32, i32
  }
  func.func @transform_5(%arg0: i32) -> (i32, i32) {
    %c0_i32 = arith.constant 0 : i32
    %c0_i32_0 = arith.constant 0 : i32
    %c0_i32_1 = arith.constant 0 : i32
    return %c0_i32, %c0_i32_0 : i32, i32
  }
  func.func @transform_6(%arg0: i32) -> (i32, i32) {
    %c0_i32 = arith.constant 0 : i32
    %c0_i32_0 = arith.constant 0 : i32
    %c0_i32_1 = arith.constant 0 : i32
    return %c0_i32, %c0_i32_0 : i32, i32
  }
  func.func @transform_7(%arg0: i32) -> (i32, i32) {
    %c0_i32 = arith.constant 0 : i32
    %c0_i32_0 = arith.constant 0 : i32
    %c0_i32_1 = arith.constant 0 : i32
    return %c0_i32, %c0_i32_0 : i32, i32
  }
  func.func @transform_8(%arg0: i32) -> (i32, i32) {
    %c0_i32 = arith.constant 0 : i32
    %c0_i32_0 = arith.constant 0 : i32
    %c0_i32_1 = arith.constant 0 : i32
    return %c0_i32, %c0_i32_0 : i32, i32
  }
  func.func @transform_9(%arg0: i32) -> (i32, i32) {
    %c0_i32 = arith.constant 0 : i32
    %c0_i32_0 = arith.constant 0 : i32
    return %arg0, %c0_i32 : i32, i32
  }
}

</mosaic_0001>

<llo_original>
// kernel: tpu_custom_call.1
$region0: #{tpu_custom_call.1}
  #allocation0 [shape = 'u32[]', space=smem, size = 0x4, offset = 0x4, fixed_abs, tag = 'smem constant byte address 0x4 - core index']
  #allocation1 [shape = 'u32[72,128]{1,0:T(1,128)}', space=vmem, size = 0x9000, scoped, tag = 'internal scratch']
  %s0 = inlined_call_operand.vmem [shape: f32[8,120], index: 0, kind: input, shape index: {}]
  %s1 = inlined_call_operand.vmem [shape: f32[120,128], index: 1, kind: input, shape index: {}]
  %s2 = inlined_call_operand.vmem [shape: f32[1,128], index: 2, kind: input, shape index: {}]
  %s3 = inlined_call_operand.hbm [shape: f32[128,512], index: 3, kind: input, shape index: {}]
  %s4 = inlined_call_operand.vmem [shape: f32[1,512], index: 4, kind: input, shape index: {}]
  %s5 = inlined_call_operand.hbm [shape: f32[512,128], index: 5, kind: input, shape index: {}]
  %s6 = inlined_call_operand.vmem [shape: f32[1,128], index: 6, kind: input, shape index: {}]
  %s7 = inlined_call_operand.vmem [shape: f32[128,120], index: 7, kind: input, shape index: {}]
  %s8 = inlined_call_operand.vmem [shape: f32[1,120], index: 8, kind: input, shape index: {}]
  %s9 = inlined_call_operand.hbm [shape: f32[8,120], index: 9, kind: output, shape index: {}]
  %s10 = sld [smem:[#allocation0]]
  $region54: #{tpu_custom_call.1} parent=0
    _
  %s12 = ssub.s32 1, %s10
  %s13 = scalar_select 0, %s12, %s10
  $region1: #{tpu_custom_call.1} parent=0
    #allocation2 [shape = 'u8[262144]{0}', space=vmem, size = 0x40000, scoped, tag = 'input window, operand 3, single buffered']
    #allocation3 [shape = 's32[1]{0}', space=sflag, size = 0x4, scoped, tag = 'scoped memory for tpu_custom_call.1']
    #allocation4 [shape = 's32[1]{0}', space=sflag, size = 0x4, scoped, tag = 'scoped memory for tpu_custom_call.1']
    #allocation5 [shape = 'u8[262144]{0}', space=vmem, size = 0x40000, scoped, tag = 'input window, operand 5, single buffered']
    #allocation6 [shape = 's32[1]{0}', space=sflag, size = 0x4, scoped, tag = 'scoped memory for tpu_custom_call.1']
    #allocation7 [shape = 'u8[4096]{0}', space=vmem, size = 0x1000, scoped, tag = 'output window, operand 0, single buffered']
    %14 = vsyncpa [#allocation3], 0
    %15 = vsyncpa [#allocation6], 0
    %16 = vsyncpa [#allocation4], 0
    // Predicated region
    $region2: #{tpu_custom_call.1} parent=1 // pred_check
      _
    $region3: #{tpu_custom_call.1} parent=1 // pred_check_branch
      %18 = sbr.rel (0) target = $region5
    $region4: #{tpu_custom_call.1} parent=1 // pred_region
      _
    $region5: #{tpu_custom_call.1} parent=1 // pred_fallthru
      _
    // Predicated region
    $region6: #{tpu_custom_call.1} parent=1 // pred_check
      _
    $region7: #{tpu_custom_call.1} parent=1 // pred_check_branch
      %20 = sbr.rel (0) target = $region9
    $region8: #{tpu_custom_call.1} parent=1 // pred_region
      _
    $region9: #{tpu_custom_call.1} parent=1 // pred_fallthru
      _
    // Predicated region
    $region10: #{tpu_custom_call.1} parent=1 // pred_check
      _
    $region11: #{tpu_custom_call.1} parent=1 // pred_check_branch
      %22 = sbr.rel (0) target = $region13
    $region12: #{tpu_custom_call.1} parent=1 // pred_region
      _
    $region13: #{tpu_custom_call.1} parent=1 // pred_fallthru
      _
    // Predicated region
    $region14: #{tpu_custom_call.1} parent=1 // pred_check
      _
    $region15: #{tpu_custom_call.1} parent=1 // pred_check_branch
      %24 = sbr.rel (0) target = $region17
    $region16: #{tpu_custom_call.1} parent=1 // pred_region
      %26 = vsyncadd [#allocation3], 0
      %s27 = sshll.u32 %s3, 4
      %s28 = int_to_ptr.hbm [resolvable:$true] %s27
      %s29 = sshll.u32 [#allocation2], 4
      %s30 = int_to_ptr.vmem [resolvable:$true] %s29
      %35 = dma.hbm_to_vmem [thread:$0]  %s28, 8192, %s30, [#allocation3], 512, 512, 32
    $region17: #{tpu_custom_call.1} parent=1 // pred_fallthru
      _
    // Predicated region
    $region18: #{tpu_custom_call.1} parent=1 // pred_check
      _
    $region19: #{tpu_custom_call.1} parent=1 // pred_check_branch
      %37 = sbr.rel (0) target = $region21
    $region20: #{tpu_custom_call.1} parent=1 // pred_region
      _
    $region21: #{tpu_custom_call.1} parent=1 // pred_fallthru
      _
    // Predicated region
    $region22: #{tpu_custom_call.1} parent=1 // pred_check
      _
    $region23: #{tpu_custom_call.1} parent=1 // pred_check_branch
      %39 = sbr.rel (0) target = $region25
    $region24: #{tpu_custom_call.1} parent=1 // pred_region
      %41 = vsyncadd [#allocation6], 0
      %s42 = sshll.u32 %s5, 4
      %s43 = int_to_ptr.hbm [resolvable:$true] %s42
      %s44 = sshll.u32 [#allocation5], 4
      %s45 = int_to_ptr.vmem [resolvable:$true] %s44
      %50 = dma.hbm_to_vmem [thread:$0]  %s43, 8192, %s45, [#allocation6], 128, 128, 8
    $region25: #{tpu_custom_call.1} parent=1 // pred_fallthru
      _
    // Predicated region
    $region26: #{tpu_custom_call.1} parent=1 // pred_check
      _
    $region27: #{tpu_custom_call.1} parent=1 // pred_check_branch
      %52 = sbr.rel (0) target = $region29
    $region28: #{tpu_custom_call.1} parent=1 // pred_region
      _
    $region29: #{tpu_custom_call.1} parent=1 // pred_fallthru
      _
    // Predicated region
    $region30: #{tpu_custom_call.1} parent=1 // pred_check
      _
    $region31: #{tpu_custom_call.1} parent=1 // pred_check_branch
      %54 = sbr.rel (0) target = $region33
    $region32: #{tpu_custom_call.1} parent=1 // pred_region
      _
    $region33: #{tpu_custom_call.1} parent=1 // pred_fallthru
      _
    // Predicated region
    $region34: #{tpu_custom_call.1} parent=1 // pred_check
      _
    $region35: #{tpu_custom_call.1} parent=1 // pred_check_branch
      %56 = sbr.rel (0) target = $region37
    $region36: #{tpu_custom_call.1} parent=1 // pred_region
      _
    $region37: #{tpu_custom_call.1} parent=1 // pred_fallthru
      _
    // Predicated region
    $region38: #{tpu_custom_call.1} parent=1 // pred_check
      _
    $region39: #{tpu_custom_call.1} parent=1 // pred_check_branch
      %58 = sbr.rel (0) target = $region41
    $region40: #{tpu_custom_call.1} parent=1 // pred_region
      %60 = dma.done [#allocation3], 8192
    $region41: #{tpu_custom_call.1} parent=1 // pred_fallthru
      _
    // Predicated region
    $region42: #{tpu_custom_call.1} parent=1 // pred_check
      _
    $region43: #{tpu_custom_call.1} parent=1 // pred_check_branch
      %62 = sbr.rel (0) target = $region45
    $region44: #{tpu_custom_call.1} parent=1 // pred_region
      %64 = dma.done [#allocation6], 8192
    $region45: #{tpu_custom_call.1} parent=1 // pred_fallthru
      _
    %v65 = vld [vmem:[%s0] sm:$0xff]
    %v66 = vld [vmem:[%s1] sm:$0xff]
    %v67 = vld [vmem:[%s1 + $0x8] sm:$0xff]
    %v68 = vld [vmem:[%s1 + $0x10] sm:$0xff]
    %v69 = vld [vmem:[%s1 + $0x18] sm:$0xff]
    %v70 = vld [vmem:[%s1 + $0x20] sm:$0xff]
    %v71 = vld [vmem:[%s1 + $0x28] sm:$0xff]
    %v72 = vld [vmem:[%s1 + $0x30] sm:$0xff]
    %v73 = vld [vmem:[%s1 + $0x38] sm:$0xff]
    %v74 = vld [vmem:[%s1 + $0x40] sm:$0xff]
    %v75 = vld [vmem:[%s1 + $0x48] sm:$0xff]
    %v76 = vld [vmem:[%s1 + $0x50] sm:$0xff]
    %v77 = vld [vmem:[%s1 + $0x58] sm:$0xff]
    %v78 = vld [vmem:[%s1 + $0x60] sm:$0xff]
    %v79 = vld [vmem:[%s1 + $0x68] sm:$0xff]
    %v80 = vld [vmem:[%s1 + $0x70] sm:$0xff]
    %v81 = vld [vmem:[%s2] sm:$0x1]
    %v83 = vperm.slane %v81, 0
    %vm85 = vcmask 982016
    %v87 = vsel %vm85, %v65, 0
    %89 = vmatpush.msra.mxu0 0.0
    %90 = vmatpush.msra.mxu0 %v80
    %91 = vmatpush.msra.mxu0 %v79
    %92 = vmatpush.msra.mxu0 %v78
    %93 = vmatpush.msra.mxu0 %v77
    %94 = vmatpush.msra.mxu0 %v76
    %95 = vmatpush.msra.mxu0 %v75
    %96 = vmatpush.msra.mxu0 %v74
    %97 = vmatpush.msra.mxu0 %v73
    %98 = vmatpush.msra.mxu0 %v72
    %99 = vmatpush.msra.mxu0 %v71
    %100 = vmatpush.msra.mxu0 %v70
    %101 = vmatpush.msra.mxu0 %v69
    %102 = vmatpush.msra.mxu0 %v68
    %103 = vmatpush.msra.mxu0 %v67
    %104 = vmatpush.msra.mxu0 %v66
    %105 = vmatmul.f32.gmra.mxu0 %v87
    %v106 = vpop.f32.mrf.mxu0
    %v107 = vadd.f32 %v83, %v106
    %108 = vdwg.mxu0
    %v109 = vmax.f32 %v107, 0.0
    %v110 = vand.u32 2147483647, %v107
    %v111 = vsub.f32 0.0, %v110
    %v112 = vmul.f32 %v111, 1.442695
    %v113 = vpow.pop %v112
    %v114 = vadd.f32 %v113, 1.0
    %v115 = vlog2.pop %v114
    %v116 = vmul.f32 %v115, 0.6931472
    %v117 = vmul.f32 -0.5, %v113
    %v118 = vadd.f32 %v117, 1.0
    %v119 = vmul.f32 %v118, %v113
    %v120 = vand.u32 2147483647, %v113
    %vm121 = vcmp.lt.f32.partialorder %v120, 0.0004427343
    %v122 = vsel %vm121, %v119, %v116
    %v123 = vadd.f32 %v109, %v122
    %v124 = vld [vmem:[#allocation2] sm:$0xff]
    %v125 = vld [vmem:[#allocation2 + $0x8] sm:$0xff]
    %v126 = vld [vmem:[#allocation2 + $0x10] sm:$0xff]
    %v127 = vld [vmem:[#allocation2 + $0x18] sm:$0xff]
    %v128 = vld [vmem:[#allocation2 + $0x20] sm:$0xff]
    %v129 = vld [vmem:[#allocation2 + $0x28] sm:$0xff]
    %v130 = vld [vmem:[#allocation2 + $0x30] sm:$0xff]
    %v131 = vld [vmem:[#allocation2 + $0x38] sm:$0xff]
    %v132 = vld [vmem:[#allocation2 + $0x40] sm:$0xff]
    %v133 = vld [vmem:[#allocation2 + $0x48] sm:$0xff]
    %v134 = vld [vmem:[#allocation2 + $0x50] sm:$0xff]
    %v135 = vld [vmem:[#allocation2 + $0x58] sm:$0xff]
    %v136 = vld [vmem:[#allocation2 + $0x60] sm:$0xff]
    %v137 = vld [vmem:[#allocation2 + $0x68] sm:$0xff]
    %v138 = vld [vmem:[#allocation2 + $0x70] sm:$0xff]
    %v139 = vld [vmem:[#allocation2 + $0x78] sm:$0xff]
    %v140 = vld [vmem:[#allocation2 + $0x80] sm:$0xff]
    %v141 = vld [vmem:[#allocation2 + $0x88] sm:$0xff]
    %v142 = vld [vmem:[#allocation2 + $0x90] sm:$0xff]
    %v143 = vld [vmem:[#allocation2 + $0x98] sm:$0xff]
    %v144 = vld [vmem:[#allocation2 + $0xa0] sm:$0xff]
    %v145 = vld [vmem:[#allocation2 + $0xa8] sm:$0xff]
    %v146 = vld [vmem:[#allocation2 + $0xb0] sm:$0xff]
    %v147 = vld [vmem:[#allocation2 + $0xb8] sm:$0xff]
    %v148 = vld [vmem:[#allocation2 + $0xc0] sm:$0xff]
    %v149 = vld [vmem:[#allocation2 + $0xc8] sm:$0xff]
    %v150 = vld [vmem:[#allocation2 + $0xd0] sm:$0xff]
    %v151 = vld [vmem:[#allocation2 + $0xd8] sm:$0xff]
    %v152 = vld [vmem:[#allocation2 + $0xe0] sm:$0xff]
    %v153 = vld [vmem:[#allocation2 + $0xe8] sm:$0xff]
    %v154 = vld [vmem:[#allocation2 + $0xf0] sm:$0xff]
    %v155 = vld [vmem:[#allocation2 + $0xf8] sm:$0xff]
    %v156 = vld [vmem:[#allocation2 + $0x100] sm:$0xff]
    %v157 = vld [vmem:[#allocation2 + $0x108] sm:$0xff]
    %v158 = vld [vmem:[#allocation2 + $0x110] sm:$0xff]
    %v159 = vld [vmem:[#allocation2 + $0x118] sm:$0xff]
    %v160 = vld [vmem:[#allocation2 + $0x120] sm:$0xff]
    %v161 = vld [vmem:[#allocation2 + $0x128] sm:$0xff]
    %v162 = vld [vmem:[#allocation2 + $0x130] sm:$0xff]
    %v163 = vld [vmem:[#allocation2 + $0x138] sm:$0xff]
    %v164 = vld [vmem:[#allocation2 + $0x140] sm:$0xff]
    %v165 = vld [vmem:[#allocation2 + $0x148] sm:$0xff]
    %v166 = vld [vmem:[#allocation2 + $0x150] sm:$0xff]
    %v167 = vld [vmem:[#allocation2 + $0x158] sm:$0xff]
    %v168 = vld [vmem:[#allocation2 + $0x160] sm:$0xff]
    %v169 = vld [vmem:[#allocation2 + $0x168] sm:$0xff]
    %v170 = vld [vmem:[#allocation2 + $0x170] sm:$0xff]
    %v171 = vld [vmem:[#allocation2 + $0x178] sm:$0xff]
    %v172 = vld [vmem:[#allocation2 + $0x180] sm:$0xff]
    %v173 = vld [vmem:[#allocation2 + $0x188] sm:$0xff]
    %v174 = vld [vmem:[#allocation2 + $0x190] sm:$0xff]
    %v175 = vld [vmem:[#allocation2 + $0x198] sm:$0xff]
    %v176 = vld [vmem:[#allocation2 + $0x1a0] sm:$0xff]
    %v177 = vld [vmem:[#allocation2 + $0x1a8] sm:$0xff]
    %v178 = vld [vmem:[#allocation2 + $0x1b0] sm:$0xff]
    %v179 = vld [vmem:[#allocation2 + $0x1b8] sm:$0xff]
    %v180 = vld [vmem:[#allocation2 + $0x1c0] sm:$0xff]
    %v181 = vld [vmem:[#allocation2 + $0x1c8] sm:$0xff]
    %v182 = vld [vmem:[#allocation2 + $0x1d0] sm:$0xff]
    %v183 = vld [vmem:[#allocation2 + $0x1d8] sm:$0xff]
    %v184 = vld [vmem:[#allocation2 + $0x1e0] sm:$0xff]
    %v185 = vld [vmem:[#allocation2 + $0x1e8] sm:$0xff]
    %v186 = vld [vmem:[#allocation2 + $0x1f0] sm:$0xff]
    %v187 = vld [vmem:[#allocation2 + $0x1f8] sm:$0xff]
    %v188 = vld [vmem:[%s4] sm:$0xf]
    %v190 = vperm.slane %v188, 0
    %v191 = vperm.slane %v188, 1
    %v192 = vperm.slane %v188, 2
    %v193 = vperm.slane %v188, 3
    %198 = vmatpush.msra.mxu0 %v184
    %199 = vmatpush.msra.mxu0 %v180
    %200 = vmatpush.msra.mxu0 %v176
    %201 = vmatpush.msra.mxu0 %v172
    %202 = vmatpush.msra.mxu0 %v168
    %203 = vmatpush.msra.mxu0 %v164
    %204 = vmatpush.msra.mxu0 %v160
    %205 = vmatpush.msra.mxu0 %v156
    %206 = vmatpush.msra.mxu0 %v152
    %207 = vmatpush.msra.mxu0 %v148
    %208 = vmatpush.msra.mxu0 %v144
    %209 = vmatpush.msra.mxu0 %v140
    %210 = vmatpush.msra.mxu0 %v136
    %211 = vmatpush.msra.mxu0 %v132
    %212 = vmatpush.msra.mxu0 %v128
    %213 = vmatpush.msra.mxu0 %v124
    %214 = vmatmul.f32.gmra.mxu0 %v123
    %v215 = vpop.f32.mrf.mxu0
    %v216 = vadd.f32 %v190, %v215
    %217 = vdwg.mxu0
    %218 = vmatpush.msra.mxu0 %v185
    %219 = vmatpush.msra.mxu0 %v181
    %220 = vmatpush.msra.mxu0 %v177
    %221 = vmatpush.msra.mxu0 %v173
    %222 = vmatpush.msra.mxu0 %v169
    %223 = vmatpush.msra.mxu0 %v165
    %224 = vmatpush.msra.mxu0 %v161
    %225 = vmatpush.msra.mxu0 %v157
    %226 = vmatpush.msra.mxu0 %v153
    %227 = vmatpush.msra.mxu0 %v149
    %228 = vmatpush.msra.mxu0 %v145
    %229 = vmatpush.msra.mxu0 %v141
    %230 = vmatpush.msra.mxu0 %v137
    %231 = vmatpush.msra.mxu0 %v133
    %232 = vmatpush.msra.mxu0 %v129
    %233 = vmatpush.msra.mxu0 %v125
    %234 = vmatmul.f32.gmra.mxu0 %v123
    %v235 = vpop.f32.mrf.mxu0
    %v236 = vadd.f32 %v191, %v235
    %237 = vdwg.mxu0
    %238 = vmatpush.msra.mxu0 %v186
    %239 = vmatpush.msra.mxu0 %v182
    %240 = vmatpush.msra.mxu0 %v178
    %241 = vmatpush.msra.mxu0 %v174
    %242 = vmatpush.msra.mxu0 %v170
    %243 = vmatpush.msra.mxu0 %v166
    %244 = vmatpush.msra.mxu0 %v162
    %245 = vmatpush.msra.mxu0 %v158
    %246 = vmatpush.msra.mxu0 %v154
    %247 = vmatpush.msra.mxu0 %v150
    %248 = vmatpush.msra.mxu0 %v146
    %249 = vmatpush.msra.mxu0 %v142
    %250 = vmatpush.msra.mxu0 %v138
    %251 = vmatpush.msra.mxu0 %v134
    %252 = vmatpush.msra.mxu0 %v130
    %253 = vmatpush.msra.mxu0 %v126
    %254 = vmatmul.f32.gmra.mxu0 %v123
    %v255 = vpop.f32.mrf.mxu0
    %v256 = vadd.f32 %v192, %v255
    %257 = vdwg.mxu0
    %258 = vmatpush.msra.mxu0 %v187
    %259 = vmatpush.msra.mxu0 %v183
    %260 = vmatpush.msra.mxu0 %v179
    %261 = vmatpush.msra.mxu0 %v175
    %262 = vmatpush.msra.mxu0 %v171
    %263 = vmatpush.msra.mxu0 %v167
    %264 = vmatpush.msra.mxu0 %v163
    %265 = vmatpush.msra.mxu0 %v159
    %266 = vmatpush.msra.mxu0 %v155
    %267 = vmatpush.msra.mxu0 %v151
    %268 = vmatpush.msra.mxu0 %v147
    %269 = vmatpush.msra.mxu0 %v143
    %270 = vmatpush.msra.mxu0 %v139
    %271 = vmatpush.msra.mxu0 %v135
    %272 = vmatpush.msra.mxu0 %v131
    %273 = vmatpush.msra.mxu0 %v127
    %274 = vmatmul.f32.gmra.mxu0 %v123
    %v275 = vpop.f32.mrf.mxu0
    %v276 = vadd.f32 %v193, %v275
    %277 = vdwg.mxu0
    %v278 = vmax.f32 %v216, 0.0
    %v279 = vmax.f32 %v236, 0.0
    %v280 = vmax.f32 %v256, 0.0
    %v281 = vmax.f32 %v276, 0.0
    %v282 = vand.u32 2147483647, %v216
    %v283 = vand.u32 2147483647, %v236
    %v284 = vand.u32 2147483647, %v256
    %v285 = vand.u32 2147483647, %v276
    %v286 = vsub.f32 0.0, %v282
    %v287 = vsub.f32 0.0, %v283
    %v288 = vsub.f32 0.0, %v284
    %v289 = vsub.f32 0.0, %v285
    %v290 = vmul.f32 %v286, 1.442695
    %v291 = vpow.pop %v290
    %v292 = vmul.f32 %v287, 1.442695
    %v293 = vpow.pop %v292
    %v294 = vmul.f32 %v288, 1.442695
    %v295 = vpow.pop %v294
    %v296 = vmul.f32 %v289, 1.442695
    %v297 = vpow.pop %v296
    %v298 = vadd.f32 %v291, 1.0
    %v299 = vlog2.pop %v298
    %v300 = vmul.f32 %v299, 0.6931472
    %v301 = vmul.f32 -0.5, %v291
    %v302 = vadd.f32 %v301, 1.0
    %v303 = vmul.f32 %v302, %v291
    %v304 = vand.u32 2147483647, %v291
    %vm305 = vcmp.lt.f32.partialorder %v304, 0.0004427343
    %v306 = vsel %vm305, %v303, %v300
    %v307 = vadd.f32 %v293, 1.0
    %v308 = vlog2.pop %v307
    %v309 = vmul.f32 %v308, 0.6931472
    %v310 = vmul.f32 -0.5, %v293
    %v311 = vadd.f32 %v310, 1.0
    %v312 = vmul.f32 %v311, %v293
    %v313 = vand.u32 2147483647, %v293
    %vm314 = vcmp.lt.f32.partialorder %v313, 0.0004427343
    %v315 = vsel %vm314, %v312, %v309
    %v316 = vadd.f32 %v295, 1.0
    %v317 = vlog2.pop %v316
    %v318 = vmul.f32 %v317, 0.6931472
    %v319 = vmul.f32 -0.5, %v295
    %v320 = vadd.f32 %v319, 1.0
    %v321 = vmul.f32 %v320, %v295
    %v322 = vand.u32 2147483647, %v295
    %vm323 = vcmp.lt.f32.partialorder %v322, 0.0004427343
    %v324 = vsel %vm323, %v321, %v318
    %v325 = vadd.f32 %v297, 1.0
    %v326 = vlog2.pop %v325
    %v327 = vmul.f32 %v326, 0.6931472
    %v328 = vmul.f32 -0.5, %v297
    %v329 = vadd.f32 %v328, 1.0
    %v330 = vmul.f32 %v329, %v297
    %v331 = vand.u32 2147483647, %v297
    %vm332 = vcmp.lt.f32.partialorder %v331, 0.0004427343
    %v333 = vsel %vm332, %v330, %v327
    %v334 = vadd.f32 %v278, %v306
    %v335 = vadd.f32 %v279, %v315
    %v336 = vadd.f32 %v280, %v324
    %v337 = vadd.f32 %v281, %v333
    %v338 = vld [vmem:[#allocation5] sm:$0xff]
    %v339 = vld [vmem:[#allocation5 + $0x8] sm:$0xff]
    %v340 = vld [vmem:[#allocation5 + $0x10] sm:$0xff]
    %v341 = vld [vmem:[#allocation5 + $0x18] sm:$0xff]
    %v342 = vld [vmem:[#allocation5 + $0x20] sm:$0xff]
    %v343 = vld [vmem:[#allocation5 + $0x28] sm:$0xff]
    %v344 = vld [vmem:[#allocation5 + $0x30] sm:$0xff]
    %v345 = vld [vmem:[#allocation5 + $0x38] sm:$0xff]
    %v346 = vld [vmem:[#allocation5 + $0x40] sm:$0xff]
    %v347 = vld [vmem:[#allocation5 + $0x48] sm:$0xff]
    %v348 = vld [vmem:[#allocation5 + $0x50] sm:$0xff]
    %v349 = vld [vmem:[#allocation5 + $0x58] sm:$0xff]
    %v350 = vld [vmem:[#allocation5 + $0x60] sm:$0xff]
    %v351 = vld [vmem:[#allocation5 + $0x68] sm:$0xff]
    %v352 = vld [vmem:[#allocation5 + $0x70] sm:$0xff]
    %v353 = vld [vmem:[#allocation5 + $0x78] sm:$0xff]
    %v354 = vld [vmem:[#allocation5 + $0x80] sm:$0xff]
    %v355 = vld [vmem:[#allocation5 + $0x88] sm:$0xff]
    %v356 = vld [vmem:[#allocation5 + $0x90] sm:$0xff]
    %v357 = vld [vmem:[#allocation5 + $0x98] sm:$0xff]
    %v358 = vld [vmem:[#allocation5 + $0xa0] sm:$0xff]
    %v359 = vld [vmem:[#allocation5 + $0xa8] sm:$0xff]
    %v360 = vld [vmem:[#allocation5 + $0xb0] sm:$0xff]
    %v361 = vld [vmem:[#allocation5 + $0xb8] sm:$0xff]
    %v362 = vld [vmem:[#allocation5 + $0xc0] sm:$0xff]
    %v363 = vld [vmem:[#allocation5 + $0xc8] sm:$0xff]
    %v364 = vld [vmem:[#allocation5 + $0xd0] sm:$0xff]
    %v365 = vld [vmem:[#allocation5 + $0xd8] sm:$0xff]
    %v366 = vld [vmem:[#allocation5 + $0xe0] sm:$0xff]
    %v367 = vld [vmem:[#allocation5 + $0xe8] sm:$0xff]
    %v368 = vld [vmem:[#allocation5 + $0xf0] sm:$0xff]
    %v369 = vld [vmem:[#allocation5 + $0xf8] sm:$0xff]
    %v370 = vld [vmem:[#allocation5 + $0x100] sm:$0xff]
    %v371 = vld [vmem:[#allocation5 + $0x108] sm:$0xff]
    %v372 = vld [vmem:[#allocation5 + $0x110] sm:$0xff]
    %v373 = vld [vmem:[#allocation5 + $0x118] sm:$0xff]
    %v374 = vld [vmem:[#allocation5 + $0x120] sm:$0xff]
    %v375 = vld [vmem:[#allocation5 + $0x128] sm:$0xff]
    %v376 = vld [vmem:[#allocation5 + $0x130] sm:$0xff]
    %v377 = vld [vmem:[#allocation5 + $0x138] sm:$0xff]
    %v378 = vld [vmem:[#allocation5 + $0x140] sm:$0xff]
    %v379 = vld [vmem:[#allocation5 + $0x148] sm:$0xff]
    %v380 = vld [vmem:[#allocation5 + $0x150] sm:$0xff]
    %v381 = vld [vmem:[#allocation5 + $0x158] sm:$0xff]
    %v382 = vld [vmem:[#allocation5 + $0x160] sm:$0xff]
    %v383 = vld [vmem:[#allocation5 + $0x168] sm:$0xff]
    %v384 = vld [vmem:[#allocation5 + $0x170] sm:$0xff]
    %v385 = vld [vmem:[#allocation5 + $0x178] sm:$0xff]
    %v386 = vld [vmem:[#allocation5 + $0x180] sm:$0xff]
    %v387 = vld [vmem:[#allocation5 + $0x188] sm:$0xff]
    %v388 = vld [vmem:[#allocation5 + $0x190] sm:$0xff]
    %v389 = vld [vmem:[#allocation5 + $0x198] sm:$0xff]
    %v390 = vld [vmem:[#allocation5 + $0x1a0] sm:$0xff]
    %v391 = vld [vmem:[#allocation5 + $0x1a8] sm:$0xff]
    %v392 = vld [vmem:[#allocation5 + $0x1b0] sm:$0xff]
    %v393 = vld [vmem:[#allocation5 + $0x1b8] sm:$0xff]
    %v394 = vld [vmem:[#allocation5 + $0x1c0] sm:$0xff]
    %v395 = vld [vmem:[#allocation5 + $0x1c8] sm:$0xff]
    %v396 = vld [vmem:[#allocation5 + $0x1d0] sm:$0xff]
    %v397 = vld [vmem:[#allocation5 + $0x1d8] sm:$0xff]
    %v398 = vld [vmem:[#allocation5 + $0x1e0] sm:$0xff]
    %v399 = vld [vmem:[#allocation5 + $0x1e8] sm:$0xff]
    %v400 = vld [vmem:[#allocation5 + $0x1f0] sm:$0xff]
    %v401 = vld [vmem:[#allocation5 + $0x1f8] sm:$0xff]
    %v402 = vld [vmem:[%s6] sm:$0x1]
    %v404 = vperm.slane %v402, 0
    %406 = vmatpush.msra.mxu0 %v353
    %407 = vmatpush.msra.mxu0 %v352
    %408 = vmatpush.msra.mxu0 %v351
    %409 = vmatpush.msra.mxu0 %v350
    %410 = vmatpush.msra.mxu0 %v349
    %411 = vmatpush.msra.mxu0 %v348
    %412 = vmatpush.msra.mxu0 %v347
    %413 = vmatpush.msra.mxu0 %v346
    %414 = vmatpush.msra.mxu0 %v345
    %415 = vmatpush.msra.mxu0 %v344
    %416 = vmatpush.msra.mxu0 %v343
    %417 = vmatpush.msra.mxu0 %v342
    %418 = vmatpush.msra.mxu0 %v341
    %419 = vmatpush.msra.mxu0 %v340
    %420 = vmatpush.msra.mxu0 %v339
    %421 = vmatpush.msra.mxu0 %v338
    %422 = vmatmul.f32.gmra.mxu0 %v334
    %v423 = vpop.f32.mrf.mxu0
    %v424 = vadd.f32 %v404, %v423
    %425 = vdwg.mxu0
    %426 = vmatpush.msra.mxu0 %v369
    %427 = vmatpush.msra.mxu0 %v368
    %428 = vmatpush.msra.mxu0 %v367
    %429 = vmatpush.msra.mxu0 %v366
    %430 = vmatpush.msra.mxu0 %v365
    %431 = vmatpush.msra.mxu0 %v364
    %432 = vmatpush.msra.mxu0 %v363
    %433 = vmatpush.msra.mxu0 %v362
    %434 = vmatpush.msra.mxu0 %v361
    %435 = vmatpush.msra.mxu0 %v360
    %436 = vmatpush.msra.mxu0 %v359
    %437 = vmatpush.msra.mxu0 %v358
    %438 = vmatpush.msra.mxu0 %v357
    %439 = vmatpush.msra.mxu0 %v356
    %440 = vmatpush.msra.mxu0 %v355
    %441 = vmatpush.msra.mxu0 %v354
    %442 = vmatmul.f32.gmra.mxu0 %v335
    %v443 = vpop.f32.mrf.mxu0
    %v444 = vadd.f32 %v424, %v443
    %445 = vdwg.mxu0
    %446 = vmatpush.msra.mxu0 %v385
    %447 = vmatpush.msra.mxu0 %v384
    %448 = vmatpush.msra.mxu0 %v383
    %449 = vmatpush.msra.mxu0 %v382
    %450 = vmatpush.msra.mxu0 %v381
    %451 = vmatpush.msra.mxu0 %v380
    %452 = vmatpush.msra.mxu0 %v379
    %453 = vmatpush.msra.mxu0 %v378
    %454 = vmatpush.msra.mxu0 %v377
    %455 = vmatpush.msra.mxu0 %v376
    %456 = vmatpush.msra.mxu0 %v375
    %457 = vmatpush.msra.mxu0 %v374
    %458 = vmatpush.msra.mxu0 %v373
    %459 = vmatpush.msra.mxu0 %v372
    %460 = vmatpush.msra.mxu0 %v371
    %461 = vmatpush.msra.mxu0 %v370
    %462 = vmatmul.f32.gmra.mxu0 %v336
    %v463 = vpop.f32.mrf.mxu0
    %v464 = vadd.f32 %v444, %v463
    %465 = vdwg.mxu0
    %466 = vmatpush.msra.mxu0 %v401
    %467 = vmatpush.msra.mxu0 %v400
    %468 = vmatpush.msra.mxu0 %v399
    %469 = vmatpush.msra.mxu0 %v398
    %470 = vmatpush.msra.mxu0 %v397
    %471 = vmatpush.msra.mxu0 %v396
    %472 = vmatpush.msra.mxu0 %v395
    %473 = vmatpush.msra.mxu0 %v394
    %474 = vmatpush.msra.mxu0 %v393
    %475 = vmatpush.msra.mxu0 %v392
    %476 = vmatpush.msra.mxu0 %v391
    %477 = vmatpush.msra.mxu0 %v390
    %478 = vmatpush.msra.mxu0 %v389
    %479 = vmatpush.msra.mxu0 %v388
    %480 = vmatpush.msra.mxu0 %v387
    %481 = vmatpush.msra.mxu0 %v386
    %482 = vmatmul.f32.gmra.mxu0 %v337
    %v483 = vpop.f32.mrf.mxu0
    %v484 = vadd.f32 %v464, %v483
    %485 = vdwg.mxu0
    %v486 = vmax.f32 %v484, 0.0
    %v487 = vand.u32 2147483647, %v484
    %v488 = vsub.f32 0.0, %v487
    %v489 = vmul.f32 %v488, 1.442695
    %v490 = vpow.pop %v489
    %v491 = vadd.f32 %v490, 1.0
    %v492 = vlog2.pop %v491
    %v493 = vmul.f32 %v492, 0.6931472
    %v494 = vmul.f32 -0.5, %v490
    %v495 = vadd.f32 %v494, 1.0
    %v496 = vmul.f32 %v495, %v490
    %v497 = vand.u32 2147483647, %v490
    %vm498 = vcmp.lt.f32.partialorder %v497, 0.0004427343
    %v499 = vsel %vm498, %v496, %v493
    %v500 = vadd.f32 %v486, %v499
    %v501 = vld [vmem:[%s7] sm:$0xff]
    %v502 = vld [vmem:[%s7 + $0x8] sm:$0xff]
    %v503 = vld [vmem:[%s7 + $0x10] sm:$0xff]
    %v504 = vld [vmem:[%s7 + $0x18] sm:$0xff]
    %v505 = vld [vmem:[%s7 + $0x20] sm:$0xff]
    %v506 = vld [vmem:[%s7 + $0x28] sm:$0xff]
    %v507 = vld [vmem:[%s7 + $0x30] sm:$0xff]
    %v508 = vld [vmem:[%s7 + $0x38] sm:$0xff]
    %v509 = vld [vmem:[%s7 + $0x40] sm:$0xff]
    %v510 = vld [vmem:[%s7 + $0x48] sm:$0xff]
    %v511 = vld [vmem:[%s7 + $0x50] sm:$0xff]
    %v512 = vld [vmem:[%s7 + $0x58] sm:$0xff]
    %v513 = vld [vmem:[%s7 + $0x60] sm:$0xff]
    %v514 = vld [vmem:[%s7 + $0x68] sm:$0xff]
    %v515 = vld [vmem:[%s7 + $0x70] sm:$0xff]
    %v516 = vld [vmem:[%s7 + $0x78] sm:$0xff]
    %v517 = vld [vmem:[%s8] sm:$0x1]
    %v519 = vperm.slane %v517, 0
    %521 = vmatpush.msra.mxu0 %v516
    %522 = vmatpush.msra.mxu0 %v515
    %523 = vmatpush.msra.mxu0 %v514
    %524 = vmatpush.msra.mxu0 %v513
    %525 = vmatpush.msra.mxu0 %v512
    %526 = vmatpush.msra.mxu0 %v511
    %527 = vmatpush.msra.mxu0 %v510
    %528 = vmatpush.msra.mxu0 %v509
    %529 = vmatpush.msra.mxu0 %v508
    %530 = vmatpush.msra.mxu0 %v507
    %531 = vmatpush.msra.mxu0 %v506
    %532 = vmatpush.msra.mxu0 %v505
    %533 = vmatpush.msra.mxu0 %v504
    %534 = vmatpush.msra.mxu0 %v503
    %535 = vmatpush.msra.mxu0 %v502
    %536 = vmatpush.msra.mxu0 %v501
    %537 = vmatmul.f32.gmra.mxu0 %v500
    %v538 = vpop.f32.mrf.mxu0
    %v539 = vadd.f32 %v519, %v538
    %540 = vdwg.mxu0
    %v541 = vmax.f32 %v539, 0.0
    %v542 = vand.u32 2147483647, %v539
    %v543 = vsub.f32 0.0, %v542
    %v544 = vmul.f32 %v543, 1.442695
    %v545 = vpow.pop %v544
    %v546 = vadd.f32 %v545, 1.0
    %v547 = vlog2.pop %v546
    %v548 = vmul.f32 %v547, 0.6931472
    %v549 = vmul.f32 -0.5, %v545
    %v550 = vadd.f32 %v549, 1.0
    %v551 = vmul.f32 %v550, %v545
    %v552 = vand.u32 2147483647, %v545
    %vm553 = vcmp.lt.f32.partialorder %v552, 0.0004427343
    %v554 = vsel %vm553, %v551, %v548
    %v555 = vadd.f32 %v541, %v554
    %556 = vst.msk [vmem:[#allocation7] sm:$0xff] %vm85, %v555
    // Predicated region
    $region46: #{tpu_custom_call.1} parent=1 // pred_check
      _
    $region47: #{tpu_custom_call.1} parent=1 // pred_check_branch
      %558 = sbr.rel (0) target = $region49
    $region48: #{tpu_custom_call.1} parent=1 // pred_region
      %560 = vsyncadd [#allocation4], 0
      %s562 = sshll.u32 [#allocation7], 4
      %s563 = int_to_ptr.vmem [resolvable:$true] %s562
      %s564 = sshll.u32 %s9, 4
      %s565 = int_to_ptr.hbm [resolvable:$true] %s564
      %567 = dma.vmem_to_hbm [thread:$0]  %s563, 128, %s565, [#allocation4]
    $region49: #{tpu_custom_call.1} parent=1 // pred_fallthru
      _
    // Predicated region
    $region50: #{tpu_custom_call.1} parent=1 // pred_check
      _
    $region51: #{tpu_custom_call.1} parent=1 // pred_check_branch
      %569 = sbr.rel (0) target = $region53
    $region52: #{tpu_custom_call.1} parent=1 // pred_region
      %571 = dma.done [#allocation4], 128
    $region53: #{tpu_custom_call.1} parent=1 // pred_fallthru
      _
    %572 = vsyncpa [#allocation3], 1
    %573 = vsyncpa [#allocation6], 1
    %574 = vsyncpa [#allocation4], 1

</llo_original>
